<compile_context>
chip_gen: v6e
topology: v6e:2x2x1
jax: 0.10.0
libtpu: 0.0.40
codegen_flags: <defaults>
</compile_context>

<pallas_src>
import jax
import jax.numpy as jnp
from jax.experimental import pallas as pl
from jax.experimental.pallas import tpu as pltpu

D_IN, H1, H2, D_OUT = 19, 15, 10, 1
HPAD = 16            # hidden width padded to a sublane multiple (>= max(H1, H2))
TB_MAX = 2048        # max batch columns per grid step (multiple of 128)


def mlp_kernel(x_ref, w1_ref, w2_ref, w3_ref, bias_ref, o_ref):
    x = x_ref[...]                                     # (D_IN, TB) f32
    bias = bias_ref[...]                               # (HPAD, 3): b1 | b2 | b3@[0,2]
    h1 = jax.nn.sigmoid(
        jnp.dot(w1_ref[...], x, preferred_element_type=jnp.float32)
        + bias[:, 0:1]
    )                                                  # (HPAD, TB)
    h2 = jax.nn.sigmoid(
        jnp.dot(w2_ref[...], h1, preferred_element_type=jnp.float32)
        + bias[:, 1:2]
    )                                                  # (HPAD, TB)
    # Final 10 -> 1 layer as an MXU matmul; output is a lane-dense (1, TB) row.
    out = (
        jnp.dot(w3_ref[...], h2, preferred_element_type=jnp.float32)
        + bias[0:1, 2:3]
    )
    o_ref[...] = out.astype(o_ref.dtype)


def init_linear(key, fan_in, fan_out):
    """Deterministic init mimicking torch.nn.Linear defaults: U(-1/sqrt(fan_in), +)."""
    kw, kb = jax.random.split(key)
    bound = 1.0 / float(fan_in) ** 0.5
    w = jax.random.uniform(kw, (fan_out, fan_in), jnp.float32, -bound, bound)
    b = jax.random.uniform(kb, (fan_out,), jnp.float32, -bound, bound)
    return w, b


def prepare_params(params):
    """One-time packing/zero-padding of torch-layout params (at init, not per call)."""
    (w1, b1), (w2, b2), (w3, b3) = params
    w1p = jnp.zeros((HPAD, D_IN), jnp.float32).at[:H1, :].set(w1)      # (16, 19)
    w2p = jnp.zeros((HPAD, HPAD), jnp.float32).at[:H2, :H1].set(w2)    # (16, 16)
    w3p = jnp.zeros((1, HPAD), jnp.float32).at[0, :H2].set(w3[0])      # (1, 16)
    bias = jnp.zeros((HPAD, 3), jnp.float32)
    bias = bias.at[:H1, 0].set(b1)     # col 0: b1 (column vector, lane-broadcast)
    bias = bias.at[:H2, 1].set(b2)     # col 1: b2
    bias = bias.at[0, 2].set(b3[0])    # [0, 2]: b3 scalar
    return w1p, w2p, w3p, bias


def _pick_tb(B):
    """Batch columns per grid step."""
    if B <= 256:
        return B                               # single step; block dims == full dims
    tb = -(-B // 2)                            # >= 2 steps so v7x uses both TCs
    tb = ((tb + 127) // 128) * 128             # lane-dense multiple of 128
    return min(tb, TB_MAX)


def mlp_forward(x, packed):
    """x: (B, 19) float32.  packed: output of prepare_params.  Returns (B, 1)."""
    w1p, w2p, w3p, bias = packed
    B = x.shape[0]
    # Lane-dense HBM layout for the kernel: each DMA'd row is B contiguous f32.
    # (A producer could hand over x already transposed and skip this copy.)
    xT = jnp.transpose(x)                      # (D_IN, B)

    tb = _pick_tb(B)
    grid = (pl.cdiv(B, tb),)

    outT = pl.pallas_call(
        mlp_kernel,
        out_shape=jax.ShapeDtypeStruct((D_OUT, B), jnp.float32),
        grid=grid,
        in_specs=[
            pl.BlockSpec((D_IN, tb), lambda i: (0, i)),      # x^T tile, pipelined
            pl.BlockSpec((HPAD, D_IN), lambda i: (0, 0)),    # w1: VMEM-resident
            pl.BlockSpec((HPAD, HPAD), lambda i: (0, 0)),    # w2: VMEM-resident
            pl.BlockSpec((1, HPAD), lambda i: (0, 0)),       # w3 row
            pl.BlockSpec((HPAD, 3), lambda i: (0, 0)),       # b1 | b2 | b3
        ],
        out_specs=pl.BlockSpec((D_OUT, tb), lambda i: (0, i)),  # lane-dense (1, tb) row
        compiler_params=pltpu.CompilerParams(
            dimension_semantics=("parallel",),
        ),
    )(xT, w1p, w2p, w3p, bias)

    return outT.reshape(B, D_OUT)              # (1, B) -> (B, 1), no data reorder


def mlp_reference(x, params):
    (w1, b1), (w2, b2), (w3, b3) = params
    h1 = jax.nn.sigmoid(x @ w1.T + b1)
    h2 = jax.nn.sigmoid(h1 @ w2.T + b2)
    return h2 @ w3.T + b3


if __name__ == "__main__":
    key = jax.random.PRNGKey(0)
    kx, k1, k2, k3 = jax.random.split(key, 4)

    params = (
        init_linear(k1, D_IN, H1),
        init_linear(k2, H1, H2),
        init_linear(k3, H2, D_OUT),
    )
    packed = prepare_params(params)            # one-time padding/packing

    # Small batch: single grid step, block dims equal full array dims.
    B = 8
    x = jax.random.normal(kx, (B, D_IN), jnp.float32)
    out = jax.block_until_ready(mlp_forward(x, packed))
    ref = mlp_reference(x, params)
    assert out.shape == (B, D_OUT)
    assert jnp.allclose(out, ref, atol=1e-5, rtol=1e-5)

    # Larger batch with B % tb != 0: exercises the 2-step grid and masked
    # partial-tile output writes (correctness-concern regression test).
    B2 = 300
    x2 = jax.random.normal(kx, (B2, D_IN), jnp.float32)
    out2 = jax.block_until_ready(mlp_forward(x2, packed))
    ref2 = mlp_reference(x2, params)
    assert out2.shape == (B2, D_OUT)
    assert jnp.allclose(out2, ref2, atol=1e-5, rtol=1e-5)

    print("KERNEL_OK")
</pallas_src>

<mosaic_0001>
module attributes {stable_mosaic.version = 11 : i64} {
  func.func @mlp_kernel(%arg0: i32, %arg1: memref<19x8xf32, #tpu.memory_space<vmem>>, %arg2: memref<16x19xf32, #tpu.memory_space<vmem>>, %arg3: memref<16x16xf32, #tpu.memory_space<vmem>>, %arg4: memref<1x16xf32, #tpu.memory_space<vmem>>, %arg5: memref<16x3xf32, #tpu.memory_space<vmem>>, %arg6: memref<1x8xf32, #tpu.memory_space<vmem>>) attributes {dimension_semantics = [#tpu.dimension_semantics<parallel>], iteration_bounds = array<i64: 1>, scalar_prefetch = 0 : i64, scratch_operands = 0 : i64, tpu.core_type = #tpu.core_type<tc>, window_params = [{transform_indices = @transform_0, window_bounds = array<i64: 19, 8>}, {pipeline_mode = #tpu.pipeline_mode<synchronous>, transform_indices = @transform_1, window_bounds = array<i64: 16, 19>}, {pipeline_mode = #tpu.pipeline_mode<synchronous>, transform_indices = @transform_2, window_bounds = array<i64: 16, 16>}, {pipeline_mode = #tpu.pipeline_mode<synchronous>, transform_indices = @transform_3, window_bounds = array<i64: 1, 16>}, {pipeline_mode = #tpu.pipeline_mode<synchronous>, transform_indices = @transform_4, window_bounds = array<i64: 16, 3>}, {transform_indices = @transform_5, window_bounds = array<i64: 1, 8>}]} {
    %c0 = arith.constant 0 : index
    %c0_0 = arith.constant 0 : index
    %0 = vector.load %arg1[%c0, %c0_0] : memref<19x8xf32, #tpu.memory_space<vmem>>, vector<19x8xf32>
    %c0_1 = arith.constant 0 : index
    %c0_2 = arith.constant 0 : index
    %1 = vector.load %arg5[%c0_1, %c0_2] : memref<16x3xf32, #tpu.memory_space<vmem>>, vector<16x3xf32>
    %c0_3 = arith.constant 0 : index
    %c0_4 = arith.constant 0 : index
    %2 = vector.load %arg2[%c0_3, %c0_4] : memref<16x19xf32, #tpu.memory_space<vmem>>, vector<16x19xf32>
    %cst = arith.constant dense<0.000000e+00> : vector<16x8xf32>
    %3 = tpu.matmul %2, %0, %cst {dimension_numbers = #tpu.dot_dimension_numbers<[1], [0], [0], [1], [0, 0, 1, 1], [], []>} : vector<16x19xf32>, vector<19x8xf32>, vector<16x8xf32> -> vector<16x8xf32>
    %4 = vector.extract_strided_slice %1 {offsets = [0, 0], sizes = [16, 1], strides = [1, 1]} : vector<16x3xf32> to vector<16x1xf32>
    %5 = vector.broadcast %4 : vector<16x1xf32> to vector<16x8xf32>
    %6 = arith.addf %3, %5 : vector<16x8xf32>
    %7 = arith.negf %6 : vector<16x8xf32>
    %8 = math.exp %7 : vector<16x8xf32>
    %cst_5 = arith.constant 1.000000e+00 : f32
    %9 = vector.broadcast %cst_5 : f32 to vector<16x8xf32>
    %10 = arith.addf %9, %8 : vector<16x8xf32>
    %11 = arith.divf %9, %10 : vector<16x8xf32>
    %c0_6 = arith.constant 0 : index
    %c0_7 = arith.constant 0 : index
    %12 = vector.load %arg3[%c0_6, %c0_7] : memref<16x16xf32, #tpu.memory_space<vmem>>, vector<16x16xf32>
    %cst_8 = arith.constant dense<0.000000e+00> : vector<16x8xf32>
    %13 = tpu.matmul %12, %11, %cst_8 {dimension_numbers = #tpu.dot_dimension_numbers<[1], [0], [0], [1], [0, 0, 1, 1], [], []>} : vector<16x16xf32>, vector<16x8xf32>, vector<16x8xf32> -> vector<16x8xf32>
    %14 = vector.extract_strided_slice %1 {offsets = [0, 1], sizes = [16, 1], strides = [1, 1]} : vector<16x3xf32> to vector<16x1xf32>
    %15 = vector.broadcast %14 : vector<16x1xf32> to vector<16x8xf32>
    %16 = arith.addf %13, %15 : vector<16x8xf32>
    %17 = arith.negf %16 : vector<16x8xf32>
    %18 = math.exp %17 : vector<16x8xf32>
    %cst_9 = arith.constant 1.000000e+00 : f32
    %19 = vector.broadcast %cst_9 : f32 to vector<16x8xf32>
    %20 = arith.addf %19, %18 : vector<16x8xf32>
    %21 = arith.divf %19, %20 : vector<16x8xf32>
    %c0_10 = arith.constant 0 : index
    %c0_11 = arith.constant 0 : index
    %22 = vector.load %arg4[%c0_10, %c0_11] : memref<1x16xf32, #tpu.memory_space<vmem>>, vector<1x16xf32>
    %cst_12 = arith.constant dense<0.000000e+00> : vector<1x8xf32>
    %23 = tpu.matmul %22, %21, %cst_12 {dimension_numbers = #tpu.dot_dimension_numbers<[1], [0], [0], [1], [0, 0, 1, 1], [], []>} : vector<1x16xf32>, vector<16x8xf32>, vector<1x8xf32> -> vector<1x8xf32>
    %24 = vector.extract_strided_slice %1 {offsets = [0, 2], sizes = [1, 1], strides = [1, 1]} : vector<16x3xf32> to vector<1x1xf32>
    %25 = vector.broadcast %24 : vector<1x1xf32> to vector<1x8xf32>
    %26 = arith.addf %23, %25 : vector<1x8xf32>
    %c0_13 = arith.constant 0 : index
    %c0_14 = arith.constant 0 : index
    %27 = vector.load %arg6[%c0_13, %c0_14] : memref<1x8xf32, #tpu.memory_space<vmem>>, vector<1x8xf32>
    tpu.vector_store %arg6[%c0_13, %c0_14], %26 {strides = array<i32>} : memref<1x8xf32, #tpu.memory_space<vmem>>, vector<1x8xf32>,
    return
  }
  func.func @transform_0(%arg0: i32) -> (i32, i32) {
    %c0_i32 = arith.constant 0 : i32
    %c0_i32_0 = arith.constant 0 : i32
    return %c0_i32, %arg0 : i32, i32
  }
  func.func @transform_1(%arg0: i32) -> (i32, i32) {
    %c0_i32 = arith.constant 0 : i32
    %c0_i32_0 = arith.constant 0 : i32
    %c0_i32_1 = arith.constant 0 : i32
    return %c0_i32, %c0_i32_0 : i32, i32
  }
  func.func @transform_2(%arg0: i32) -> (i32, i32) {
    %c0_i32 = arith.constant 0 : i32
    %c0_i32_0 = arith.constant 0 : i32
    %c0_i32_1 = arith.constant 0 : i32
    return %c0_i32, %c0_i32_0 : i32, i32
  }
  func.func @transform_3(%arg0: i32) -> (i32, i32) {
    %c0_i32 = arith.constant 0 : i32
    %c0_i32_0 = arith.constant 0 : i32
    %c0_i32_1 = arith.constant 0 : i32
    return %c0_i32, %c0_i32_0 : i32, i32
  }
  func.func @transform_4(%arg0: i32) -> (i32, i32) {
    %c0_i32 = arith.constant 0 : i32
    %c0_i32_0 = arith.constant 0 : i32
    %c0_i32_1 = arith.constant 0 : i32
    return %c0_i32, %c0_i32_0 : i32, i32
  }
  func.func @transform_5(%arg0: i32) -> (i32, i32) {
    %c0_i32 = arith.constant 0 : i32
    %c0_i32_0 = arith.constant 0 : i32
    return %c0_i32, %arg0 : i32, i32
  }
}

</mosaic_0001>

<llo_original>
// kernel: tpu_custom_call.1
$region0: #{tpu_custom_call.1}
  #allocation0 [shape = 'u32[]', space=smem, size = 0x4, offset = 0x4, fixed_abs, tag = 'smem constant byte address 0x4 - core index']
  #allocation1 [shape = 'u32[144,128]{1,0:T(1,128)}', space=vmem, size = 0x12000, scoped, tag = 'internal scratch']
  %s0 = inlined_call_operand.vmem [shape: f32[19,8], index: 0, kind: input, shape index: {}]
  %s1 = inlined_call_operand.vmem [shape: f32[16,19], index: 1, kind: input, shape index: {}]
  %s2 = inlined_call_operand.vmem [shape: f32[16,16], index: 2, kind: input, shape index: {}]
  %s3 = inlined_call_operand.vmem [shape: f32[1,16], index: 3, kind: input, shape index: {}]
  %s4 = inlined_call_operand.vmem [shape: f32[16,3], index: 4, kind: input, shape index: {}]
  %s5 = inlined_call_operand.hbm [shape: f32[1,8], index: 5, kind: output, shape index: {}]
  %s6 = sld [smem:[#allocation0]]
  $region30: #{tpu_custom_call.1} parent=0
    _
  %s8 = ssub.s32 1, %s6
  %s9 = scalar_select 0, %s8, %s6
  $region1: #{tpu_custom_call.1} parent=0
    #allocation2 [shape = 'u8[512]{0}', space=vmem, size = 0x400, scoped, tag = 'output window, operand 0, single buffered']
    #allocation3 [shape = 's32[1]{0}', space=sflag, size = 0x4, scoped, tag = 'scoped memory for tpu_custom_call.1']
    %10 = vsyncpa [#allocation3], 0
    // Predicated region
    $region2: #{tpu_custom_call.1} parent=1 // pred_check
      _
    $region3: #{tpu_custom_call.1} parent=1 // pred_check_branch
      %12 = sbr.rel (0) target = $region5
    $region4: #{tpu_custom_call.1} parent=1 // pred_region
      _
    $region5: #{tpu_custom_call.1} parent=1 // pred_fallthru
      _
    // Predicated region
    $region6: #{tpu_custom_call.1} parent=1 // pred_check
      _
    $region7: #{tpu_custom_call.1} parent=1 // pred_check_branch
      %14 = sbr.rel (0) target = $region9
    $region8: #{tpu_custom_call.1} parent=1 // pred_region
      _
    $region9: #{tpu_custom_call.1} parent=1 // pred_fallthru
      _
    // Predicated region
    $region10: #{tpu_custom_call.1} parent=1 // pred_check
      _
    $region11: #{tpu_custom_call.1} parent=1 // pred_check_branch
      %16 = sbr.rel (0) target = $region13
    $region12: #{tpu_custom_call.1} parent=1 // pred_region
      _
    $region13: #{tpu_custom_call.1} parent=1 // pred_fallthru
      _
    // Predicated region
    $region14: #{tpu_custom_call.1} parent=1 // pred_check
      _
    $region15: #{tpu_custom_call.1} parent=1 // pred_check_branch
      %18 = sbr.rel (0) target = $region17
    $region16: #{tpu_custom_call.1} parent=1 // pred_region
      _
    $region17: #{tpu_custom_call.1} parent=1 // pred_fallthru
      _
    // Predicated region
    $region18: #{tpu_custom_call.1} parent=1 // pred_check
      _
    $region19: #{tpu_custom_call.1} parent=1 // pred_check_branch
      %20 = sbr.rel (0) target = $region21
    $region20: #{tpu_custom_call.1} parent=1 // pred_region
      _
    $region21: #{tpu_custom_call.1} parent=1 // pred_fallthru
      _
    %v21 = vld [vmem:[%s0] sm:$0xff]
    %v22 = vld [vmem:[%s0 + $0x8] sm:$0xff]
    %v23 = vld [vmem:[%s0 + $0x10] sm:$0x7]
    %v24 = vld [vmem:[%s4] sm:$0xff]
    %v25 = vld [vmem:[%s4 + $0x8] sm:$0xff]
    %v26 = vld [vmem:[%s1] sm:$0xff]
    %v27 = vld [vmem:[%s1 + $0x8] sm:$0xff]
    %29 = vset.pattern.permute.xlu0 0
    %30 = vperm.xlu0 %29, %v24
    %v31 = vpop.permute.xlu0 %30
    %34 = vset.pattern.permute.xlu0 0
    %35 = vperm.xlu0 %34, %v25
    %v36 = vpop.permute.xlu0 %35
    %vm38 = vcmask 154624
    %v40 = vsel %vm38, %v26, 0
    %v43 = vsel %vm38, %v27, 0
    %vm45 = vcmask 1042432
    %v47 = vsel %vm45, %v23, 0
    %49 = vmatprep.subr.mxu0 0.0
    %50 = vmatpush1.msra.mxu0 0.0
    %51 = vmatprep.subr.mxu0 0.0
    %52 = vmatpush1.msra.mxu0 0.0
    %53 = vmatprep.subr.mxu0 0.0
    %54 = vmatpush1.msra.mxu0 0.0
    %55 = vmatprep.subr.mxu0 0.0
    %56 = vmatpush1.msra.mxu0 0.0
    %57 = vmatprep.subr.mxu0 0.0
    %58 = vmatpush1.msra.mxu0 0.0
    %59 = vmatprep.subr.mxu0 0.0
    %60 = vmatpush1.msra.mxu0 0.0
    %61 = vmatprep.subr.mxu0 0.0
    %62 = vmatpush1.msra.mxu0 0.0
    %63 = vmatprep.subr.mxu0 0.0
    %64 = vmatpush1.msra.mxu0 0.0
    %65 = vmatprep.subr.mxu0 0.0
    %66 = vmatpush1.msra.mxu0 0.0
    %67 = vmatprep.subr.mxu0 0.0
    %68 = vmatpush1.msra.mxu0 0.0
    %69 = vmatprep.subr.mxu0 0.0
    %70 = vmatpush1.msra.mxu0 0.0
    %71 = vmatprep.subr.mxu0 0.0
    %72 = vmatpush1.msra.mxu0 0.0
    %73 = vmatprep.subr.mxu0 0.0
    %74 = vmatpush1.msra.mxu0 0.0
    %75 = vmatprep.subr.mxu0 0.0
    %76 = vmatpush1.msra.mxu0 %v47
    %77 = vmatprep.subr.mxu0 0.0
    %78 = vmatpush1.msra.mxu0 %v22
    %79 = vmatprep.subr.mxu0 0.0
    %80 = vmatpush1.msra.mxu0 %v21
    %81 = vmatprep.subr.mxu0 0.0
    %82 = vmatpush2.msra.mxu0 0.0
    %83 = vmatprep.subr.mxu0 0.0
    %84 = vmatpush2.msra.mxu0 0.0
    %85 = vmatprep.subr.mxu0 0.0
    %86 = vmatpush2.msra.mxu0 0.0
    %87 = vmatprep.subr.mxu0 0.0
    %88 = vmatpush2.msra.mxu0 0.0
    %89 = vmatprep.subr.mxu0 0.0
    %90 = vmatpush2.msra.mxu0 0.0
    %91 = vmatprep.subr.mxu0 0.0
    %92 = vmatpush2.msra.mxu0 0.0
    %93 = vmatprep.subr.mxu0 0.0
    %94 = vmatpush2.msra.mxu0 0.0
    %95 = vmatprep.subr.mxu0 0.0
    %96 = vmatpush2.msra.mxu0 0.0
    %97 = vmatprep.subr.mxu0 0.0
    %98 = vmatpush2.msra.mxu0 0.0
    %99 = vmatprep.subr.mxu0 0.0
    %100 = vmatpush2.msra.mxu0 0.0
    %101 = vmatprep.subr.mxu0 0.0
    %102 = vmatpush2.msra.mxu0 0.0
    %103 = vmatprep.subr.mxu0 0.0
    %104 = vmatpush2.msra.mxu0 0.0
    %105 = vmatprep.subr.mxu0 0.0
    %106 = vmatpush2.msra.mxu0 0.0
    %107 = vmatprep.subr.mxu0 0.0
    %108 = vmatpush2.msra.mxu0 0.0
    %109 = vmatprep.subr.mxu0 0.0
    %110 = vmatpush2.msra.mxu0 0.0
    %111 = vmatprep.subr.mxu0 0.0
    %112 = vmatpush2.msra.mxu0 0.0
    %113 = vmatprep.mubr.f32.mxu0 0.0
    %114 = vmatmul.mubr.f32.gmra.mxu0 %v40
    %v115 = vpop.f32.mrf.mxu0
    %v116 = vadd.f32 %v31, %v115
    %v117 = vpop.f32.mrf.mxu0
    %118 = vmatprep.mubr.f32.mxu0 0.0
    %119 = vmatmul.mubr.f32.gmra.mxu0 %v43
    %v120 = vpop.f32.mrf.mxu0
    %v121 = vadd.f32 %v36, %v120
    %v122 = vpop.f32.mrf.mxu0
    %123 = vdwg.mxu0
    %v124 = vxor.u32 %v116, 2147483648
    %v125 = vxor.u32 %v121, 2147483648
    %v126 = vmul.f32 %v124, 1.442695
    %v127 = vpow.pop %v126
    %v128 = vmul.f32 %v125, 1.442695
    %v129 = vpow.pop %v128
    %v130 = vadd.f32 %v127, 1.0
    %v131 = vadd.f32 %v129, 1.0
    %v132 = vrcp.pop %v130
    %v133 = vmul.f32 1.0, %v132
    %v134 = vrcp.pop %v131
    %v135 = vmul.f32 1.0, %v134
    %v136 = vld [vmem:[%s2] sm:$0xff]
    %v137 = vld [vmem:[%s2 + $0x8] sm:$0xff]
    %138 = vset.pattern.permute.xlu0 1
    %139 = vperm.xlu0 %138, %v24
    %v140 = vpop.permute.xlu0 %139
    %142 = vset.pattern.permute.xlu0 1
    %143 = vperm.xlu0 %142, %v25
    %v144 = vpop.permute.xlu0 %143
    %vm146 = vcmask 130048
    %v148 = vsel %vm146, %v136, 0
    %v151 = vsel %vm146, %v137, 0
    %153 = vmatprep.subr.mxu0 0.0
    %154 = vmatpush1.msra.mxu0 0.0
    %155 = vmatprep.subr.mxu0 0.0
    %156 = vmatpush1.msra.mxu0 0.0
    %157 = vmatprep.subr.mxu0 0.0
    %158 = vmatpush1.msra.mxu0 0.0
    %159 = vmatprep.subr.mxu0 0.0
    %160 = vmatpush1.msra.mxu0 0.0
    %161 = vmatprep.subr.mxu0 0.0
    %162 = vmatpush1.msra.mxu0 0.0
    %163 = vmatprep.subr.mxu0 0.0
    %164 = vmatpush1.msra.mxu0 0.0
    %165 = vmatprep.subr.mxu0 0.0
    %166 = vmatpush1.msra.mxu0 0.0
    %167 = vmatprep.subr.mxu0 0.0
    %168 = vmatpush1.msra.mxu0 0.0
    %169 = vmatprep.subr.mxu0 0.0
    %170 = vmatpush1.msra.mxu0 0.0
    %171 = vmatprep.subr.mxu0 0.0
    %172 = vmatpush1.msra.mxu0 0.0
    %173 = vmatprep.subr.mxu0 0.0
    %174 = vmatpush1.msra.mxu0 0.0
    %175 = vmatprep.subr.mxu0 0.0
    %176 = vmatpush1.msra.mxu0 0.0
    %177 = vmatprep.subr.mxu0 0.0
    %178 = vmatpush1.msra.mxu0 0.0
    %179 = vmatprep.subr.mxu0 0.0
    %180 = vmatpush1.msra.mxu0 0.0
    %181 = vmatprep.subr.mxu0 0.0
    %182 = vmatpush1.msra.mxu0 %v135
    %183 = vmatprep.subr.mxu0 0.0
    %184 = vmatpush1.msra.mxu0 %v133
    %185 = vmatprep.subr.mxu0 0.0
    %186 = vmatpush2.msra.mxu0 0.0
    %187 = vmatprep.subr.mxu0 0.0
    %188 = vmatpush2.msra.mxu0 0.0
    %189 = vmatprep.subr.mxu0 0.0
    %190 = vmatpush2.msra.mxu0 0.0
    %191 = vmatprep.subr.mxu0 0.0
    %192 = vmatpush2.msra.mxu0 0.0
    %193 = vmatprep.subr.mxu0 0.0
    %194 = vmatpush2.msra.mxu0 0.0
    %195 = vmatprep.subr.mxu0 0.0
    %196 = vmatpush2.msra.mxu0 0.0
    %197 = vmatprep.subr.mxu0 0.0
    %198 = vmatpush2.msra.mxu0 0.0
    %199 = vmatprep.subr.mxu0 0.0
    %200 = vmatpush2.msra.mxu0 0.0
    %201 = vmatprep.subr.mxu0 0.0
    %202 = vmatpush2.msra.mxu0 0.0
    %203 = vmatprep.subr.mxu0 0.0
    %204 = vmatpush2.msra.mxu0 0.0
    %205 = vmatprep.subr.mxu0 0.0
    %206 = vmatpush2.msra.mxu0 0.0
    %207 = vmatprep.subr.mxu0 0.0
    %208 = vmatpush2.msra.mxu0 0.0
    %209 = vmatprep.subr.mxu0 0.0
    %210 = vmatpush2.msra.mxu0 0.0
    %211 = vmatprep.subr.mxu0 0.0
    %212 = vmatpush2.msra.mxu0 0.0
    %213 = vmatprep.subr.mxu0 0.0
    %214 = vmatpush2.msra.mxu0 0.0
    %215 = vmatprep.subr.mxu0 0.0
    %216 = vmatpush2.msra.mxu0 0.0
    %217 = vmatprep.mubr.f32.mxu0 0.0
    %218 = vmatmul.mubr.f32.gmra.mxu0 %v148
    %v219 = vpop.f32.mrf.mxu0
    %v220 = vadd.f32 %v140, %v219
    %v221 = vpop.f32.mrf.mxu0
    %222 = vmatprep.mubr.f32.mxu0 0.0
    %223 = vmatmul.mubr.f32.gmra.mxu0 %v151
    %v224 = vpop.f32.mrf.mxu0
    %v225 = vadd.f32 %v144, %v224
    %v226 = vpop.f32.mrf.mxu0
    %227 = vdwg.mxu0
    %v228 = vxor.u32 %v220, 2147483648
    %v229 = vxor.u32 %v225, 2147483648
    %v230 = vmul.f32 %v228, 1.442695
    %v231 = vpow.pop %v230
    %v232 = vmul.f32 %v229, 1.442695
    %v233 = vpow.pop %v232
    %v234 = vadd.f32 %v231, 1.0
    %v235 = vadd.f32 %v233, 1.0
    %v236 = vrcp.pop %v234
    %v237 = vmul.f32 1.0, %v236
    %v238 = vrcp.pop %v235
    %v239 = vmul.f32 1.0, %v238
    %v240 = vld [vmem:[%s3] sm:$0x1]
    %241 = vset.pattern.permute.xlu0 2
    %242 = vperm.xlu0 %241, %v24
    %v243 = vpop.permute.xlu0 %242
    %v246 = vsel %vm146, %v240, 0
    %248 = vmatprep.subr.mxu0 0.0
    %249 = vmatpush1.msra.mxu0 0.0
    %250 = vmatprep.subr.mxu0 0.0
    %251 = vmatpush1.msra.mxu0 0.0
    %252 = vmatprep.subr.mxu0 0.0
    %253 = vmatpush1.msra.mxu0 0.0
    %254 = vmatprep.subr.mxu0 0.0
    %255 = vmatpush1.msra.mxu0 0.0
    %256 = vmatprep.subr.mxu0 0.0
    %257 = vmatpush1.msra.mxu0 0.0
    %258 = vmatprep.subr.mxu0 0.0
    %259 = vmatpush1.msra.mxu0 0.0
    %260 = vmatprep.subr.mxu0 0.0
    %261 = vmatpush1.msra.mxu0 0.0
    %262 = vmatprep.subr.mxu0 0.0
    %263 = vmatpush1.msra.mxu0 0.0
    %264 = vmatprep.subr.mxu0 0.0
    %265 = vmatpush1.msra.mxu0 0.0
    %266 = vmatprep.subr.mxu0 0.0
    %267 = vmatpush1.msra.mxu0 0.0
    %268 = vmatprep.subr.mxu0 0.0
    %269 = vmatpush1.msra.mxu0 0.0
    %270 = vmatprep.subr.mxu0 0.0
    %271 = vmatpush1.msra.mxu0 0.0
    %272 = vmatprep.subr.mxu0 0.0
    %273 = vmatpush1.msra.mxu0 0.0
    %274 = vmatprep.subr.mxu0 0.0
    %275 = vmatpush1.msra.mxu0 0.0
    %276 = vmatprep.subr.mxu0 0.0
    %277 = vmatpush1.msra.mxu0 %v239
    %278 = vmatprep.subr.mxu0 0.0
    %279 = vmatpush1.msra.mxu0 %v237
    %280 = vmatprep.subr.mxu0 0.0
    %281 = vmatpush2.msra.mxu0 0.0
    %282 = vmatprep.subr.mxu0 0.0
    %283 = vmatpush2.msra.mxu0 0.0
    %284 = vmatprep.subr.mxu0 0.0
    %285 = vmatpush2.msra.mxu0 0.0
    %286 = vmatprep.subr.mxu0 0.0
    %287 = vmatpush2.msra.mxu0 0.0
    %288 = vmatprep.subr.mxu0 0.0
    %289 = vmatpush2.msra.mxu0 0.0
    %290 = vmatprep.subr.mxu0 0.0
    %291 = vmatpush2.msra.mxu0 0.0
    %292 = vmatprep.subr.mxu0 0.0
    %293 = vmatpush2.msra.mxu0 0.0
    %294 = vmatprep.subr.mxu0 0.0
    %295 = vmatpush2.msra.mxu0 0.0
    %296 = vmatprep.subr.mxu0 0.0
    %297 = vmatpush2.msra.mxu0 0.0
    %298 = vmatprep.subr.mxu0 0.0
    %299 = vmatpush2.msra.mxu0 0.0
    %300 = vmatprep.subr.mxu0 0.0
    %301 = vmatpush2.msra.mxu0 0.0
    %302 = vmatprep.subr.mxu0 0.0
    %303 = vmatpush2.msra.mxu0 0.0
    %304 = vmatprep.subr.mxu0 0.0
    %305 = vmatpush2.msra.mxu0 0.0
    %306 = vmatprep.subr.mxu0 0.0
    %307 = vmatpush2.msra.mxu0 0.0
    %308 = vmatprep.subr.mxu0 0.0
    %309 = vmatpush2.msra.mxu0 0.0
    %310 = vmatprep.subr.mxu0 0.0
    %311 = vmatpush2.msra.mxu0 0.0
    %312 = vmatprep.mubr.f32.mxu0 0.0
    %313 = vmatmul.mubr.f32.gmra.mxu0 %v246
    %v314 = vpop.f32.mrf.mxu0
    %v315 = vadd.f32 %v243, %v314
    %v316 = vpop.f32.mrf.mxu0
    %317 = vdwg.mxu0
    %vm318 = vcmask 57344
    %319 = vst.msk [vmem:[#allocation2] sm:$0x1] %vm318, %v315
    // Predicated region
    $region22: #{tpu_custom_call.1} parent=1 // pred_check
      _
    $region23: #{tpu_custom_call.1} parent=1 // pred_check_branch
      %321 = sbr.rel (0) target = $region25
    $region24: #{tpu_custom_call.1} parent=1 // pred_region
      %s323 = ssub.s32 16, 16
      %324 = vsyncadd [#allocation3], %s323
      %s326 = sshll.u32 [#allocation2], 4
      %s327 = int_to_ptr.vmem [resolvable:$true] %s326
      %329 = dma.vmem_to_hbm [thread:$0]  %s327, 16, %s5, [#allocation3]
    $region25: #{tpu_custom_call.1} parent=1 // pred_fallthru
      _
    // Predicated region
    $region26: #{tpu_custom_call.1} parent=1 // pred_check
      _
    $region27: #{tpu_custom_call.1} parent=1 // pred_check_branch
      %331 = sbr.rel (0) target = $region29
    $region28: #{tpu_custom_call.1} parent=1 // pred_region
      %332 = dma.done [#allocation3], 16
    $region29: #{tpu_custom_call.1} parent=1 // pred_fallthru
      _
    %333 = vsyncpa [#allocation3], 1

</llo_original>
